<compile_context>
chip_gen: v7x
topology: tpu7x:2x2x1
jax: 0.10.0
libtpu: 0.0.40
codegen_flags: <defaults>
</compile_context>

<pallas_src>
import jax
import jax.numpy as jnp
from jax.experimental import pallas as pl
from jax.experimental.pallas import tpu as pltpu

_LANES = 128
_SUBLANES = 8
_MAX_BLOCK_ROWS = 2048   # 2048x128 f32 = 1 MiB/input/step; x2 inputs x2 bufs = 4 MiB VMEM
_ROW_ALIGN = 16          # satisfies min sublane tiling for f32 (8) and bf16/f16 (16)
_NCORES = 2              # leading "parallel" grid axis (megacore on v7x; serial elsewhere)
_SMOOTH = 1e-8
_NEG_FILL = -1e4         # sigmoid(-1e4) == 0.0 exactly in f32


def _dice_partials_kernel(x_ref, t_ref, o_ref, acc_ref):
    """Accumulate per-lane partial sums of (sig(x)*t, sig(x)+t) in VMEM."""
    s = pl.program_id(1)

    @pl.when(s == 0)
    def _():
        acc_ref[...] = jnp.zeros_like(acc_ref)

    x = jax.nn.sigmoid(x_ref[...].astype(jnp.float32))   # (block_rows, 128)
    t = t_ref[...].astype(jnp.float32)

    r = x.shape[0] // _SUBLANES
    # Reshape keeps (8,128) tiles intact -> sum over axis 0 is vreg-wise VPU adds.
    acc_ref[0] += jnp.sum((x * t).reshape(r, _SUBLANES, _LANES), axis=0)
    acc_ref[1] += jnp.sum((x + t).reshape(r, _SUBLANES, _LANES), axis=0)

    @pl.when(s == pl.num_programs(1) - 1)
    def _():
        o_ref[...] = acc_ref[...]


def _round_up(v, m):
    return (v + m - 1) // m * m


def dice_loss(inputs, targets, smooth=_SMOOTH):
    """Pallas TPU implementation of DiceLoss.forward (smooth=1e-8)."""
    x = jnp.ravel(inputs)
    t = jnp.ravel(targets)
    # Stream native floating dtypes (bf16 halves HBM bytes); cast ints to f32.
    if not jnp.issubdtype(x.dtype, jnp.floating):
        x = x.astype(jnp.float32)
    if not jnp.issubdtype(t.dtype, jnp.floating):
        t = t.astype(jnp.float32)
    n = x.shape[0]

    rows = pl.cdiv(n, _LANES)
    # Size the block from the per-core share so medium inputs don't pad up to
    # a whole extra core block; cap keeps double-buffered VMEM use at ~4 MiB.
    block_rows = min(_MAX_BLOCK_ROWS, _round_up(pl.cdiv(rows, _NCORES), _ROW_ALIGN))
    steps = pl.cdiv(rows, _NCORES * block_rows)
    total_rows = _NCORES * steps * block_rows
    n_padded = total_rows * _LANES

    pad = n_padded - n
    if pad:
        # TODO(synk): for very large ragged inputs this materializes a padded
        # copy (extra HBM pass); an in-kernel last-block mask would avoid it.
        x = jnp.pad(x, (0, pad), constant_values=_NEG_FILL)  # sigmoid -> 0
        t = jnp.pad(t, (0, pad), constant_values=0)
    x2 = x.reshape(total_rows, _LANES)
    t2 = t.reshape(total_rows, _LANES)

    in_map = lambda c, s: (c * steps + s, 0)

    partials = pl.pallas_call(
        _dice_partials_kernel,
        out_shape=jax.ShapeDtypeStruct((_NCORES * 2, _SUBLANES, _LANES), jnp.float32),
        grid_spec=pltpu.PrefetchScalarGridSpec(
            num_scalar_prefetch=0,
            grid=(_NCORES, steps),
            in_specs=[
                pl.BlockSpec((block_rows, _LANES), in_map),
                pl.BlockSpec((block_rows, _LANES), in_map),
            ],
            out_specs=pl.BlockSpec((2, _SUBLANES, _LANES), lambda c, s: (c, 0, 0)),
            scratch_shapes=[pltpu.VMEM((2, _SUBLANES, _LANES), jnp.float32)],
        ),
        compiler_params=pltpu.CompilerParams(
            dimension_semantics=("parallel", "arbitrary"),
        ),
    )(x2, t2)

    # Tiny finalize: reduce per-core per-lane partials, then apply dice formula.
    sums = jnp.sum(partials.reshape(_NCORES, 2, -1), axis=(0, 2))  # (2,)
    dice = (2.0 * sums[0] + smooth) / (sums[1] + smooth)
    return 1.0 - dice


def _dice_loss_ref(inputs, targets, smooth=_SMOOTH):
    x = jax.nn.sigmoid(inputs.astype(jnp.float32)).ravel()
    t = targets.astype(jnp.float32).ravel()
    inter = jnp.sum(x * t)
    dice = (2.0 * inter + smooth) / (jnp.sum(x) + jnp.sum(t) + smooth)
    return 1.0 - dice


if __name__ == "__main__":
    key = jax.random.PRNGKey(0)
    k1, k2 = jax.random.split(key)
    # Small NCHW-like shapes consistent with a segmentation logit map.
    inputs = jax.random.normal(k1, (2, 4, 16, 16), dtype=jnp.float32)
    targets = (jax.random.uniform(k2, (2, 4, 16, 16)) > 0.5).astype(jnp.float32)

    loss = dice_loss(inputs, targets)
    jax.block_until_ready(loss)

    ref = _dice_loss_ref(inputs, targets)
    assert jnp.allclose(loss, ref, atol=1e-5, rtol=1e-5), (loss, ref)
    print("KERNEL_OK")
</pallas_src>

<mosaic_0001>
module attributes {stable_mosaic.version = 11 : i64} {
  func.func @_dice_partials_kernel(%arg0: i32, %arg1: i32, %arg2: memref<16x128xf32, #tpu.memory_space<vmem>>, %arg3: memref<16x128xf32, #tpu.memory_space<vmem>>, %arg4: memref<2x8x128xf32, #tpu.memory_space<vmem>>, %arg5: memref<2x8x128xf32, #tpu.memory_space<vmem>>) attributes {dimension_semantics = [#tpu.dimension_semantics<parallel>, #tpu.dimension_semantics<arbitrary>], iteration_bounds = array<i64: 2, 1>, scalar_prefetch = 0 : i64, scratch_operands = 1 : i64, tpu.core_type = #tpu.core_type<tc>, window_params = [{transform_indices = @transform_0, window_bounds = array<i64: 16, 128>}, {transform_indices = @transform_1, window_bounds = array<i64: 16, 128>}, {transform_indices = @transform_2, window_bounds = array<i64: 2, 8, 128>}]} {
    %c0_i32 = arith.constant 0 : i32
    %0 = arith.cmpi eq, %arg1, %c0_i32 : i32
    %1 = arith.extui %0 : i1 to i32
    %c0_i32_0 = arith.constant 0 : i32
    %2 = arith.cmpi ne, %1, %c0_i32_0 : i32
    scf.if %2 {
      %cst_19 = arith.constant 0.000000e+00 : f32
      %31 = vector.broadcast %cst_19 : f32 to vector<2x8x128xf32>
      %c0_20 = arith.constant 0 : index
      %c0_21 = arith.constant 0 : index
      %c0_22 = arith.constant 0 : index
      %32 = vector.load %arg5[%c0_20, %c0_21, %c0_22] : memref<2x8x128xf32, #tpu.memory_space<vmem>>, vector<2x8x128xf32>
      tpu.vector_store %arg5[%c0_20, %c0_21, %c0_22], %31 {strides = array<i32>} : memref<2x8x128xf32, #tpu.memory_space<vmem>>, vector<2x8x128xf32>,
    } else {
    }
    %c0 = arith.constant 0 : index
    %c0_1 = arith.constant 0 : index
    %3 = vector.load %arg2[%c0, %c0_1] : memref<16x128xf32, #tpu.memory_space<vmem>>, vector<16x128xf32>
    %4 = arith.negf %3 : vector<16x128xf32>
    %5 = math.exp %4 : vector<16x128xf32>
    %cst = arith.constant 1.000000e+00 : f32
    %6 = vector.broadcast %cst : f32 to vector<16x128xf32>
    %7 = arith.addf %6, %5 : vector<16x128xf32>
    %8 = arith.divf %6, %7 : vector<16x128xf32>
    %c0_2 = arith.constant 0 : index
    %c0_3 = arith.constant 0 : index
    %9 = vector.load %arg3[%c0_2, %c0_3] : memref<16x128xf32, #tpu.memory_space<vmem>>, vector<16x128xf32>
    %c0_4 = arith.constant 0 : index
    %c0_5 = arith.constant 0 : index
    %c0_6 = arith.constant 0 : index
    %10 = vector.load %arg5[%c0_4, %c0_5, %c0_6] : memref<2x8x128xf32, #tpu.memory_space<vmem>>, vector<1x8x128xf32>
    %11 = vector.shape_cast %10 : vector<1x8x128xf32> to vector<8x128xf32>
    %12 = arith.mulf %8, %9 : vector<16x128xf32>
    %13 = vector.shape_cast %12 : vector<16x128xf32> to vector<2x8x128xf32>
    %cst_7 = arith.constant dense<0.000000e+00> : vector<8x128xf32>
    %14 = vector.multi_reduction <add>, %13, %cst_7 [0] : vector<2x8x128xf32> to vector<8x128xf32>
    %15 = arith.addf %11, %14 : vector<8x128xf32>
    %c0_8 = arith.constant 0 : index
    %c0_9 = arith.constant 0 : index
    %c0_10 = arith.constant 0 : index
    %16 = vector.load %arg5[%c0_8, %c0_9, %c0_10] : memref<2x8x128xf32, #tpu.memory_space<vmem>>, vector<1x8x128xf32>
    %17 = vector.shape_cast %16 : vector<1x8x128xf32> to vector<8x128xf32>
    %18 = vector.shape_cast %15 : vector<8x128xf32> to vector<1x8x128xf32>
    tpu.vector_store %arg5[%c0_8, %c0_9, %c0_10], %18 {strides = array<i32>} : memref<2x8x128xf32, #tpu.memory_space<vmem>>, vector<1x8x128xf32>,
    %c1 = arith.constant 1 : index
    %c0_11 = arith.constant 0 : index
    %c0_12 = arith.constant 0 : index
    %19 = vector.load %arg5[%c1, %c0_11, %c0_12] : memref<2x8x128xf32, #tpu.memory_space<vmem>>, vector<1x8x128xf32>
    %20 = vector.shape_cast %19 : vector<1x8x128xf32> to vector<8x128xf32>
    %21 = arith.addf %8, %9 : vector<16x128xf32>
    %22 = vector.shape_cast %21 : vector<16x128xf32> to vector<2x8x128xf32>
    %cst_13 = arith.constant dense<0.000000e+00> : vector<8x128xf32>
    %23 = vector.multi_reduction <add>, %22, %cst_13 [0] : vector<2x8x128xf32> to vector<8x128xf32>
    %24 = arith.addf %20, %23 : vector<8x128xf32>
    %c1_14 = arith.constant 1 : index
    %c0_15 = arith.constant 0 : index
    %c0_16 = arith.constant 0 : index
    %25 = vector.load %arg5[%c1_14, %c0_15, %c0_16] : memref<2x8x128xf32, #tpu.memory_space<vmem>>, vector<1x8x128xf32>
    %26 = vector.shape_cast %25 : vector<1x8x128xf32> to vector<8x128xf32>
    %27 = vector.shape_cast %24 : vector<8x128xf32> to vector<1x8x128xf32>
    tpu.vector_store %arg5[%c1_14, %c0_15, %c0_16], %27 {strides = array<i32>} : memref<2x8x128xf32, #tpu.memory_space<vmem>>, vector<1x8x128xf32>,
    %c0_i32_17 = arith.constant 0 : i32
    %28 = arith.cmpi eq, %arg1, %c0_i32_17 : i32
    %29 = arith.extui %28 : i1 to i32
    %c0_i32_18 = arith.constant 0 : i32
    %30 = arith.cmpi ne, %29, %c0_i32_18 : i32
    scf.if %30 {
      %c0_19 = arith.constant 0 : index
      %c0_20 = arith.constant 0 : index
      %c0_21 = arith.constant 0 : index
      %31 = vector.load %arg5[%c0_19, %c0_20, %c0_21] : memref<2x8x128xf32, #tpu.memory_space<vmem>>, vector<2x8x128xf32>
      %c0_22 = arith.constant 0 : index
      %c0_23 = arith.constant 0 : index
      %c0_24 = arith.constant 0 : index
      %32 = vector.load %arg4[%c0_22, %c0_23, %c0_24] : memref<2x8x128xf32, #tpu.memory_space<vmem>>, vector<2x8x128xf32>
      tpu.vector_store %arg4[%c0_22, %c0_23, %c0_24], %31 {strides = array<i32>} : memref<2x8x128xf32, #tpu.memory_space<vmem>>, vector<2x8x128xf32>,
    } else {
    }
    return
  }
  func.func @transform_0(%arg0: i32, %arg1: i32) -> (i32, i32) {
    %c1_i32 = arith.constant 1 : i32
    %0 = arith.muli %arg0, %c1_i32 : i32
    %1 = arith.addi %0, %arg1 : i32
    %c0_i32 = arith.constant 0 : i32
    %c0_i32_0 = arith.constant 0 : i32
    return %1, %c0_i32 : i32, i32
  }
  func.func @transform_1(%arg0: i32, %arg1: i32) -> (i32, i32) {
    %c1_i32 = arith.constant 1 : i32
    %0 = arith.muli %arg0, %c1_i32 : i32
    %1 = arith.addi %0, %arg1 : i32
    %c0_i32 = arith.constant 0 : i32
    %c0_i32_0 = arith.constant 0 : i32
    return %1, %c0_i32 : i32, i32
  }
  func.func @transform_2(%arg0: i32, %arg1: i32) -> (i32, i32, i32) {
    %c0_i32 = arith.constant 0 : i32
    %c0_i32_0 = arith.constant 0 : i32
    %c0_i32_1 = arith.constant 0 : i32
    return %arg0, %c0_i32, %c0_i32_0 : i32, i32, i32
  }
}

</mosaic_0001>

<llo_original>
// kernel: tpu_custom_call.1
$region0: #{tpu_custom_call.1}
  #allocation0 [shape = 'u32[]', space=smem, size = 0x4, offset = 0x4, fixed_abs, tag = 'smem constant byte address 0x4 - core index']
  #allocation1 [shape = 'u32[144,128]{1,0:T(1,128)}', space=vmem, size = 0x12000, scoped, tag = 'internal scratch']
  #allocation2 [shape = 'f32[2,8,128]{2,1,0:T(8,128)}', space=vmem, size = 0x2000, scoped, tag = 'scratch operand']
  %s0 = inlined_call_operand.hbm [shape: f32[32,128], index: 0, kind: input, shape index: {}]
  %s1 = inlined_call_operand.hbm [shape: f32[32,128], index: 1, kind: input, shape index: {}]
  %s2 = inlined_call_operand.hbm [shape: f32[4,8,128], index: 2, kind: output, shape index: {}]
  %s3 = sld [smem:[#allocation0]]
  $region57: #{tpu_custom_call.1} parent=0
    _
  %s5 = ssub.s32 1, %s3
  %s6 = scalar_select 0, %s5, %s3
  $region1: #{tpu_custom_call.1} parent=0
    #allocation3 [shape = 'u8[16384]{0}', space=vmem, size = 0x4000, scoped, tag = 'input window, operand 0']
    #allocation4 [shape = 's32[2]{0}', space=sflag, size = 0x8, scoped, tag = 'scoped memory for tpu_custom_call.1']
    #allocation5 [shape = 's32[2]{0}', space=sflag, size = 0x8, scoped, tag = 'scoped memory for tpu_custom_call.1']
    #allocation6 [shape = 'u8[16384]{0}', space=vmem, size = 0x4000, scoped, tag = 'input window, operand 1']
    #allocation7 [shape = 's32[2]{0}', space=sflag, size = 0x8, scoped, tag = 'scoped memory for tpu_custom_call.1']
    #allocation8 [shape = 'u8[16384]{0}', space=vmem, size = 0x4000, scoped, tag = 'output window, operand 0']
    %7 = vsyncpa [#allocation4], 0
    %s8 = scalar_lea.sflag [#allocation4], 1
    %9 = vsyncpa %s8, 0
    %10 = vsyncpa [#allocation7], 0
    %s11 = scalar_lea.sflag [#allocation7], 1
    %12 = vsyncpa %s11, 0
    %13 = vsyncpa [#allocation5], 0
    %s14 = scalar_lea.sflag [#allocation5], 1
    %15 = vsyncpa %s14, 0
    loop: start=0, step=1, limit=4
    $region2: #{tpu_custom_call.1} parent=1 // loop_pre_header
      _
    $region3: #{tpu_custom_call.1} parent=1 // loop_header
      %s17 = sphi 0, %s21
      %p18 = scmp.ge.s32.totalorder %s17, 4
      %s24 = sphi 0, %s36
      %s25 = sphi 0, %s32
      %s26 = sphi 0, %s24
      %s27 = sphi 0, %s25
      %s28 = sphi 0, %s26
      %s29 = sphi 0, %s27
      %s41 = sphi 0, %s43
      %s44 = sphi 0, %s41
      %s45 = sphi 0, %s44
      %s61 = sphi 0, %s45
      %s69 = sphi 0, %s71
      %s72 = sphi 0, %s69
      %s73 = sphi 0, %s72
      %s89 = sphi 0, %s73
      %s95 = sphi 0, %s97
      %s98 = sphi 0, %s95
      %s99 = sphi 0, %s98
      %s115 = sphi 0, %s99
    $region4: #{tpu_custom_call.1} parent=1 // loop_header_branch
      %20 = sbr.rel (%p18) target = $region8
    $region5: #{tpu_custom_call.1} parent=1 // loop_body
      %s22 = ssub.s32 %s17, 1
      %s23 = ssub.s32 %s17, 2
      %s30 = sadd.s32 1, %s25
      %p31 = scmp.ge.s32.totalorder %s30, 1
      %s32 = scalar_select %p31, 0, %s30
      %s33 = sadd.s32 1, %s24
      %s34 = scalar_select %p31, %s33, %s24
      %p35 = scmp.ge.s32.totalorder %s34, 2
      %s36 = scalar_select %p35, 0, %s34
      %s37 = sadd.s32 %s24, %s25
      %s38 = sadd.s32 %s36, %s32
      %s39 = ssub.s32 %s37, %s38
      %p40 = scmp.eq.s32.totalorder %s39, 0
      %s42 = sadd.s32 %s41, 1
      %s43 = scalar_select %p40, %s41, %s42
      %p46 = pneg %p40
      %p47 = scmp.eq.s32.totalorder %s17, 1
      %p48 = por %p46, %p47
      %p49 = scmp.ne.s32.totalorder %s41, %s44
      %p50 = scmp.eq.s32.totalorder %s17, 0
      %p51 = por %p49, %p50
      %p52 = scmp.ne.s32.totalorder %s41, %s44
      %p53 = scmp.eq.s32.totalorder %s22, 1
      %p54 = por %p52, %p53
      %p55 = scmp.ne.s32.totalorder %s44, %s45
      %p56 = scmp.eq.s32.totalorder %s22, 0
      %p57 = por %p55, %p56
      %p58 = scmp.ne.s32.totalorder %s44, %s45
      %p59 = scmp.eq.s32.totalorder %s23, 1
      %p60 = por %p58, %p59
      %p62 = scmp.ne.s32.totalorder %s45, %s61
      %p63 = scmp.eq.s32.totalorder %s23, 0
      %p64 = por %p62, %p63
      %s65 = sadd.s32 %s24, %s25
      %s66 = sadd.s32 %s36, %s32
      %s67 = ssub.s32 %s65, %s66
      %p68 = scmp.eq.s32.totalorder %s67, 0
      %s70 = sadd.s32 %s69, 1
      %s71 = scalar_select %p68, %s69, %s70
      %p74 = pneg %p68
      %p75 = scmp.eq.s32.totalorder %s17, 1
      %p76 = por %p74, %p75
      %p77 = scmp.ne.s32.totalorder %s69, %s72
      %p78 = scmp.eq.s32.totalorder %s17, 0
      %p79 = por %p77, %p78
      %p80 = scmp.ne.s32.totalorder %s69, %s72
      %p81 = scmp.eq.s32.totalorder %s22, 1
      %p82 = por %p80, %p81
      %p83 = scmp.ne.s32.totalorder %s72, %s73
      %p84 = scmp.eq.s32.totalorder %s22, 0
      %p85 = por %p83, %p84
      %p86 = scmp.ne.s32.totalorder %s72, %s73
      %p87 = scmp.eq.s32.totalorder %s23, 1
      %p88 = por %p86, %p87
      %p90 = scmp.ne.s32.totalorder %s73, %s89
      %p91 = scmp.eq.s32.totalorder %s23, 0
      %p92 = por %p90, %p91
      %s93 = ssub.s32 %s24, %s36
      %p94 = scmp.eq.s32.totalorder %s93, 0
      %s96 = sadd.s32 %s95, 1
      %s97 = scalar_select %p94, %s95, %s96
      %p100 = pneg %p94
      %p101 = scmp.eq.s32.totalorder %s17, 1
      %p102 = por %p100, %p101
      %p103 = scmp.ne.s32.totalorder %s95, %s98
      %p104 = scmp.eq.s32.totalorder %s17, 0
      %p105 = por %p103, %p104
      %p106 = scmp.ne.s32.totalorder %s95, %s98
      %p107 = scmp.eq.s32.totalorder %s22, 1
      %p108 = por %p106, %p107
      %p109 = scmp.ne.s32.totalorder %s98, %s99
      %p110 = scmp.eq.s32.totalorder %s22, 0
      %p111 = por %p109, %p110
      %p112 = scmp.ne.s32.totalorder %s98, %s99
      %p113 = scmp.eq.s32.totalorder %s23, 1
      %p114 = por %p112, %p113
      %p116 = scmp.ne.s32.totalorder %s99, %s115
      %p117 = scmp.eq.s32.totalorder %s23, 0
      %p118 = por %p116, %p117
      %p119 = scmp.le.s32.totalorder 1, %s17
      %p120 = scmp.lt.s32.totalorder %s17, 3
      %p121 = pnand %p119, %p120
      %p122 = pneg %p121
      // Predicated region
      $region9: #{tpu_custom_call.1} parent=5 // pred_check
        _
      $region10: #{tpu_custom_call.1} parent=5 // pred_check_branch
        %124 = sbr.rel (%p121) target = $region12
      $region11: #{tpu_custom_call.1} parent=5 // pred_region
        %s125 = ssub.s32 %s17, 1
      $region12: #{tpu_custom_call.1} parent=5 // pred_fallthru
        _
      %p126 = scmp.lt.s32.totalorder %s17, 2
      // Predicated region
      $region13: #{tpu_custom_call.1} parent=5 // pred_check
        %p127 = pneg %p126
      $region14: #{tpu_custom_call.1} parent=5 // pred_check_branch
        %129 = sbr.rel (%p127) target = $region16
      $region15: #{tpu_custom_call.1} parent=5 // pred_region
        // Predicated region
        $region17: #{tpu_custom_call.1} parent=15 // pred_check
          %p130 = pneg %p51
        $region18: #{tpu_custom_call.1} parent=15 // pred_check_branch
          %132 = sbr.rel (%p130) target = $region20
        $region19: #{tpu_custom_call.1} parent=15 // pred_region
          %s133 = sand.u32 %s41, 1
          %s134 = scalar_lea.sflag [#allocation4], %s133
          %s135 = sand.u32 %s41, 1
          %s136 = smul.addr %s135, 16
          %s137 = scalar_lea.vmem [#allocation3], %s136
          %s138 = sadd.s32 %s24, %s25
          %s139 = smul.u32 2, %s138
          %s141 = ssub.s32 256, 256
          %142 = vsyncadd %s134, %s141
          %s143 = smul.addr %s139, 128
          %s144 = scalar_lea.hbm %s0, %s143
          %s145 = sshll.u32 %s137, 4
          %s146 = int_to_ptr.vmem [resolvable:$true] %s145
          %151 = dma.hbm_to_vmem [thread:$0]  %s144, 256, %s146, %s134, 128, 128, 8
        $region20: #{tpu_custom_call.1} parent=15 // pred_fallthru
          _
        // Predicated region
        $region21: #{tpu_custom_call.1} parent=15 // pred_check
          %p152 = pneg %p79
        $region22: #{tpu_custom_call.1} parent=15 // pred_check_branch
          %154 = sbr.rel (%p152) target = $region24
        $region23: #{tpu_custom_call.1} parent=15 // pred_region
          %s155 = sand.u32 %s69, 1
          %s156 = scalar_lea.sflag [#allocation7], %s155
          %s157 = sand.u32 %s69, 1
          %s158 = smul.addr %s157, 16
          %s159 = scalar_lea.vmem [#allocation6], %s158
          %s160 = sadd.s32 %s24, %s25
          %s161 = smul.u32 2, %s160
          %s163 = ssub.s32 256, 256
          %164 = vsyncadd %s156, %s163
          %s165 = smul.addr %s161, 128
          %s166 = scalar_lea.hbm %s1, %s165
          %s167 = sshll.u32 %s159, 4
          %s168 = int_to_ptr.vmem [resolvable:$true] %s167
          %173 = dma.hbm_to_vmem [thread:$0]  %s166, 256, %s168, %s156, 128, 128, 8
        $region24: #{tpu_custom_call.1} parent=15 // pred_fallthru
          _
      $region16: #{tpu_custom_call.1} parent=5 // pred_fallthru
        _
      %p174 = scmp.le.s32.totalorder 1, %s17
      %p175 = scmp.lt.s32.totalorder %s17, 3
      %p176 = pnand %p174, %p175
      %p177 = pneg %p176
      // Predicated region
      $region25: #{tpu_custom_call.1} parent=5 // pred_check
        _
      $region26: #{tpu_custom_call.1} parent=5 // pred_check_branch
        %179 = sbr.rel (%p176) target = $region28
      $region27: #{tpu_custom_call.1} parent=5 // pred_region
        %s180 = ssub.s32 %s17, 1
        %s181 = sand.u32 %s44, 1
        %s182 = scalar_lea.sflag [#allocation4], %s181
        %s183 = sand.u32 %s44, 1
        %s184 = smul.addr %s183, 16
        %s185 = scalar_lea.vmem [#allocation3], %s184
        // Predicated region
        $region29: #{tpu_custom_call.1} parent=27 // pred_check
          %p186 = pneg %p57
        $region30: #{tpu_custom_call.1} parent=27 // pred_check_branch
          %188 = sbr.rel (%p186) target = $region32
        $region31: #{tpu_custom_call.1} parent=27 // pred_region
          %189 = dma.done %s182, 256
        $region32: #{tpu_custom_call.1} parent=27 // pred_fallthru
          _
        %s190 = sand.u32 %s72, 1
        %s191 = scalar_lea.sflag [#allocation7], %s190
        %s192 = sand.u32 %s72, 1
        %s193 = smul.addr %s192, 16
        %s194 = scalar_lea.vmem [#allocation6], %s193
        // Predicated region
        $region33: #{tpu_custom_call.1} parent=27 // pred_check
          %p195 = pneg %p85
        $region34: #{tpu_custom_call.1} parent=27 // pred_check_branch
          %197 = sbr.rel (%p195) target = $region36
        $region35: #{tpu_custom_call.1} parent=27 // pred_region
          %198 = dma.done %s191, 256
        $region36: #{tpu_custom_call.1} parent=27 // pred_fallthru
          _
        %s199 = sand.u32 %s44, 1
        %s200 = scalar_lea.sflag [#allocation4], %s199
        %s201 = sand.u32 %s44, 1
        %s202 = smul.addr %s201, 16
        %s203 = scalar_lea.vmem [#allocation3], %s202
        %p204 = pneg %p57
        %p205 = pneg %p54
        %s206 = sand.u32 %s72, 1
        %s207 = scalar_lea.sflag [#allocation7], %s206
        %s208 = sand.u32 %s72, 1
        %s209 = smul.addr %s208, 16
        %s210 = scalar_lea.vmem [#allocation6], %s209
        %p211 = pneg %p85
        %p212 = pneg %p82
        %p213 = pneg %p111
        %p214 = pneg %p108
        %s215 = sand.u32 %s98, 1
        %s216 = scalar_lea.sflag [#allocation5], %s215
        %s217 = sand.u32 %s98, 1
        %s218 = smul.addr %s217, 16
        %s219 = scalar_lea.vmem [#allocation8], %s218
        %s220 = sadd.s32 %s26, %s27
        %s221 = smul.u32 2, %s220
        %s222 = sadd.s32 %s26, %s27
        %s223 = smul.u32 2, %s222
        %s224 = smul.u32 2, %s26
        %p225 = scmp.eq.s32.totalorder %s27, 0
        // Predicated region
        $region37: #{tpu_custom_call.1} parent=27 // pred_check
          %p226 = pneg %p225
        $region38: #{tpu_custom_call.1} parent=27 // pred_check_branch
          %228 = sbr.rel (%p226) target = $region40
        $region39: #{tpu_custom_call.1} parent=27 // pred_region
          %229 = vst [vmem:[#allocation2] sm:$0xff] 0.0
          %230 = vst [vmem:[#allocation2 + $0x8] sm:$0xff] 0.0
        $region40: #{tpu_custom_call.1} parent=27 // pred_fallthru
          _
        %v231 = vld [vmem:[%s185] sm:$0xff]
        %v232 = vld [vmem:[%s185 + $0x8] sm:$0xff]
        %v233 = vxor.u32 %v231, 2147483648
        %v234 = vxor.u32 %v232, 2147483648
        %v235 = vmul.f32 %v233, 1.442695
        %v236 = vpow.pop %v235
        %v237 = vmul.f32 %v234, 1.442695
        %v238 = vpow.pop %v237
        %v239 = vadd.f32 %v236, 1.0
        %v240 = vadd.f32 %v238, 1.0
        %v241 = vrcp.pop %v239
        %v242 = vmul.f32 1.0, %v241
        %v243 = vrcp.pop %v240
        %v244 = vmul.f32 1.0, %v243
        %v245 = vld [vmem:[%s194] sm:$0xff]
        %v246 = vld [vmem:[%s194 + $0x8] sm:$0xff]
        %v247 = vld [vmem:[#allocation2] sm:$0xff]
        %v248 = vmul.f32 %v242, %v245
        %v249 = vmul.f32 %v244, %v246
        %v250 = vadd.f32 %v248, %v249
        %v251 = vadd.f32 %v247, %v250
        %252 = vst [vmem:[#allocation2] sm:$0xff] %v251
        %s253 = scalar_lea.vmem [#allocation2], 8
        %v254 = vld [vmem:[%s253] sm:$0xff]
        %v255 = vadd.f32 %v242, %v245
        %v256 = vadd.f32 %v244, %v246
        %v257 = vadd.f32 %v255, %v256
        %v258 = vadd.f32 %v254, %v257
        %259 = vst [vmem:[%s253] sm:$0xff] %v258
        // Predicated region
        $region41: #{tpu_custom_call.1} parent=27 // pred_check
          %p260 = pneg %p225
        $region42: #{tpu_custom_call.1} parent=27 // pred_check_branch
          %262 = sbr.rel (%p260) target = $region44
        $region43: #{tpu_custom_call.1} parent=27 // pred_region
          %v263 = vld [vmem:[#allocation2] sm:$0xff]
          %v264 = vld [vmem:[#allocation2 + $0x8] sm:$0xff]
          %265 = vst [vmem:[%s219] sm:$0xff] %v263
          %266 = vst [vmem:[%s219 + $0x8] sm:$0xff] %v264
        $region44: #{tpu_custom_call.1} parent=27 // pred_fallthru
          _
        %s267 = sand.u32 %s98, 1
        %s268 = scalar_lea.sflag [#allocation5], %s267
        %s269 = sand.u32 %s98, 1
        %s270 = smul.addr %s269, 16
        %s271 = scalar_lea.vmem [#allocation8], %s270
        // Predicated region
        $region45: #{tpu_custom_call.1} parent=27 // pred_check
          %p272 = pneg %p108
        $region46: #{tpu_custom_call.1} parent=27 // pred_check_branch
          %274 = sbr.rel (%p272) target = $region48
        $region47: #{tpu_custom_call.1} parent=27 // pred_region
          %s275 = smul.u32 2, %s26
          %s277 = ssub.s32 256, 256
          %278 = vsyncadd %s268, %s277
          %s279 = smul.addr %s275, 128
          %s280 = scalar_lea.hbm %s2, %s279
          %s281 = sshll.u32 %s271, 4
          %s282 = int_to_ptr.vmem [resolvable:$true] %s281
          %287 = dma.vmem_to_hbm [thread:$0]  %s282, 256, %s280, %s268, 128, 128, 8
        $region48: #{tpu_custom_call.1} parent=27 // pred_fallthru
          _
      $region28: #{tpu_custom_call.1} parent=5 // pred_fallthru
        _
      %p288 = scmp.le.s32.totalorder 2, %s17
      // Predicated region
      $region49: #{tpu_custom_call.1} parent=5 // pred_check
        %p289 = pneg %p288
      $region50: #{tpu_custom_call.1} parent=5 // pred_check_branch
        %291 = sbr.rel (%p289) target = $region52
      $region51: #{tpu_custom_call.1} parent=5 // pred_region
        %s292 = ssub.s32 %s17, 2
        // Predicated region
        $region53: #{tpu_custom_call.1} parent=51 // pred_check
          %p293 = pneg %p114
        $region54: #{tpu_custom_call.1} parent=51 // pred_check_branch
          %295 = sbr.rel (%p293) target = $region56
        $region55: #{tpu_custom_call.1} parent=51 // pred_region
          %s296 = sand.u32 %s99, 1
          %s297 = scalar_lea.sflag [#allocation5], %s296
          %s298 = sand.u32 %s99, 1
          %s299 = smul.addr %s298, 16
          %s300 = scalar_lea.vmem [#allocation8], %s299
          %301 = dma.done %s297, 256
        $region56: #{tpu_custom_call.1} parent=51 // pred_fallthru
          _
      $region52: #{tpu_custom_call.1} parent=5 // pred_fallthru
        _
    $region6: #{tpu_custom_call.1} parent=1 // loop_footer
      %s21 = sadd.s32 1, %s17
    $region7: #{tpu_custom_call.1} parent=1 // loop_footer_branch
      %16 = sbr.rel target = $region3
    $region8: #{tpu_custom_call.1} parent=1 // loop_exit
      _
    %302 = vsyncpa [#allocation4], 1
    %s303 = scalar_lea.sflag [#allocation4], 1
    %304 = vsyncpa %s303, 1
    %305 = vsyncpa [#allocation7], 1
    %s306 = scalar_lea.sflag [#allocation7], 1
    %307 = vsyncpa %s306, 1
    %308 = vsyncpa [#allocation5], 1
    %s309 = scalar_lea.sflag [#allocation5], 1
    %310 = vsyncpa %s309, 1

</llo_original>
